<compile_context>
chip_gen: v5e
topology: v5e:2x2
jax: 0.10.0
libtpu: 0.0.40
codegen_flags: <defaults>
</compile_context>

<pallas_src>
import jax
import jax.numpy as jnp
from jax.experimental import pallas as pl
from jax.experimental.pallas import tpu as pltpu


def _linear_bias_kernel(x_ref, w_ref, b_ref, o_ref, acc_ref):
    # x_ref: (tm, tk)  w_ref: (tk, tn)  b_ref: (1, tn)  o_ref: (tm, tn)
    k = pl.program_id(2)

    @pl.when(k == 0)
    def _():
        acc_ref[...] = jnp.zeros_like(acc_ref)

    acc_ref[...] += jnp.dot(
        x_ref[...], w_ref[...], preferred_element_type=jnp.float32
    )

    @pl.when(k == pl.num_programs(2) - 1)
    def _():
        o_ref[...] = (acc_ref[...] + b_ref[...].astype(jnp.float32)).astype(o_ref.dtype)


def _pick_tile(size, preferred, align):
    """Largest tile <= `preferred` that is a multiple of `align` and evenly
    divides `size`; falls back to the full extent for small / unaligned dims
    (legal because a block equal to the full array dim bypasses the (8,128) rule)."""
    if size % align != 0:
        return size
    t = min(preferred, size)
    t -= t % align
    while t >= align:
        if size % t == 0:
            return t
        t -= align
    return size


def _fused_linear_bias(x2d, weight, bias2d, *, tm_pref=256, tn_pref=256, tk_pref=256):
    """y[M, N] = x2d[M, K] @ weight[K, N] + bias2d[1, N], tiled + pipelined."""
    m, kdim = x2d.shape
    n = weight.shape[1]
    assert weight.shape[0] == kdim and bias2d.shape == (1, n)

    tm = _pick_tile(m, tm_pref, 8)       # sublane-aligned
    tn = _pick_tile(n, tn_pref, 128)     # lane-aligned (unmasked vst)
    tk = _pick_tile(kdim, tk_pref, 128)  # lane for x, sublane for W
    grid = (m // tm, n // tn, kdim // tk)

    itemsize = jnp.dtype(x2d.dtype).itemsize
    bytes_accessed = (
        m * kdim * itemsize                                   # x
        + kdim * n * jnp.dtype(weight.dtype).itemsize         # W
        + n * jnp.dtype(bias2d.dtype).itemsize                # bias
        + m * n * itemsize                                    # y
    )
    cost = pl.CostEstimate(
        flops=2 * m * kdim * n, transcendentals=0, bytes_accessed=bytes_accessed
    )

    return pl.pallas_call(
        _linear_bias_kernel,
        out_shape=jax.ShapeDtypeStruct((m, n), x2d.dtype),
        grid_spec=pltpu.PrefetchScalarGridSpec(
            num_scalar_prefetch=0,
            grid=grid,
            in_specs=[
                pl.BlockSpec((tm, tk), lambda i, j, k: (i, k)),
                pl.BlockSpec((tk, tn), lambda i, j, k: (k, j)),
                pl.BlockSpec((1, tn), lambda i, j, k: (0, j)),
            ],
            out_specs=pl.BlockSpec((tm, tn), lambda i, j, k: (i, j)),
            scratch_shapes=[pltpu.VMEM((tm, tn), jnp.float32)],
        ),
        compiler_params=pltpu.CompilerParams(
            dimension_semantics=("parallel", "parallel", "arbitrary"),
            vmem_limit_bytes=48 * 1024 * 1024,  # headroom even on v7x's 64 MiB VMEM
        ),
        cost_estimate=cost,
    )(x2d, weight, bias2d)


def qkv_linear_pallas(x, weight, bias, qk_dim):
    """x: (..., dim); weight: (dim, 2*qk_dim + dim); bias: (2*qk_dim + dim,).
    Returns (q, kv) exactly like QKVLinear.forward."""
    dim = x.shape[-1]
    out_dim = weight.shape[1]
    assert weight.shape[0] == dim
    assert out_dim == 2 * qk_dim + dim

    lead_shape = x.shape[:-1]
    m = 1
    for s in lead_shape:
        m *= s
    x2d = x.reshape(m, dim)

    # Split the (small) parameters by output column once; the (large) activation
    # outputs q and kv are then emitted directly -> no post-hoc HBM slice of y.
    w_q = weight[:, :qk_dim]
    w_kv = weight[:, qk_dim:]
    b_q = bias[:qk_dim].reshape(1, qk_dim)
    b_kv = bias[qk_dim:].reshape(1, out_dim - qk_dim)

    q2d = _fused_linear_bias(x2d, w_q, b_q)
    kv2d = _fused_linear_bias(x2d, w_kv, b_kv)

    q = q2d.reshape(*lead_shape, qk_dim)
    kv = kv2d.reshape(*lead_shape, qk_dim + dim)
    return q, kv


def qkv_linear_ref(x, weight, bias, qk_dim):
    y = (
        jnp.einsum("...d,do->...o", x, weight, precision=jax.lax.Precision.HIGHEST)
        + bias
    )
    return y[..., :qk_dim], y[..., qk_dim:]


def _run_case(key, batch, seq, dim, qk_dim, atol):
    out_dim = 2 * qk_dim + dim
    kx, kw, kb = jax.random.split(key, 3)
    x = jax.random.normal(kx, (batch, seq, dim), dtype=jnp.float32)
    weight = (jax.random.uniform(kw, (dim, out_dim), dtype=jnp.float32) - 0.5) * (
        2.0 / dim
    ) ** 0.5
    bias = (jax.random.uniform(kb, (out_dim,), dtype=jnp.float32) - 0.5) * (
        1.0 / dim
    ) ** 0.5

    q, kv = qkv_linear_pallas(x, weight, bias, qk_dim)
    q, kv = jax.block_until_ready((q, kv))

    q_ref, kv_ref = qkv_linear_ref(x, weight, bias, qk_dim)
    assert q.shape == (batch, seq, qk_dim) and kv.shape == (batch, seq, qk_dim + dim)
    assert jnp.allclose(q, q_ref, atol=atol, rtol=atol)
    assert jnp.allclose(kv, kv_ref, atol=atol, rtol=atol)


if __name__ == "__main__":
    key = jax.random.PRNGKey(0)
    k_small, k_tiled = jax.random.split(key)

    # Small shapes consistent with the module (batch=2, seq=8, dim=32, qk_dim=16):
    # blocks fall back to full extents -> single grid step.
    _run_case(k_small, batch=2, seq=8, dim=32, qk_dim=16, atol=1e-5)

    # Moderately larger lane-aligned shapes to exercise the tiled / pipelined path
    # (M=512, K=256, N in {128, 384} -> multi-tile grid with K accumulation).
    _run_case(k_tiled, batch=2, seq=256, dim=256, qk_dim=128, atol=1e-3)

    print("KERNEL_OK")
</pallas_src>

<mosaic_0001>
module attributes {stable_mosaic.version = 11 : i64} {
  func.func @_linear_bias_kernel(%arg0: i32, %arg1: i32, %arg2: i32, %arg3: memref<16x32xf32, #tpu.memory_space<vmem>>, %arg4: memref<32x16xf32, #tpu.memory_space<vmem>>, %arg5: memref<1x16xf32, #tpu.memory_space<vmem>>, %arg6: memref<16x16xf32, #tpu.memory_space<vmem>>, %arg7: memref<16x16xf32, #tpu.memory_space<vmem>>) attributes {dimension_semantics = [#tpu.dimension_semantics<parallel>, #tpu.dimension_semantics<parallel>, #tpu.dimension_semantics<arbitrary>], iteration_bounds = array<i64: 1, 1, 1>, scalar_prefetch = 0 : i64, scratch_operands = 1 : i64, tpu.core_type = #tpu.core_type<tc>, window_params = [{transform_indices = @transform_0, window_bounds = array<i64: 16, 32>}, {transform_indices = @transform_1, window_bounds = array<i64: 32, 16>}, {transform_indices = @transform_2, window_bounds = array<i64: 1, 16>}, {transform_indices = @transform_3, window_bounds = array<i64: 16, 16>}]} {
    %c0_i32 = arith.constant 0 : i32
    %0 = arith.cmpi eq, %arg2, %c0_i32 : i32
    %1 = arith.extui %0 : i1 to i32
    %c0_i32_0 = arith.constant 0 : i32
    %2 = arith.cmpi ne, %1, %c0_i32_0 : i32
    scf.if %2 {
      %cst_10 = arith.constant 0.000000e+00 : f32
      %12 = vector.broadcast %cst_10 : f32 to vector<16x16xf32>
      %c0_11 = arith.constant 0 : index
      %c0_12 = arith.constant 0 : index
      %13 = vector.load %arg7[%c0_11, %c0_12] : memref<16x16xf32, #tpu.memory_space<vmem>>, vector<16x16xf32>
      tpu.vector_store %arg7[%c0_11, %c0_12], %12 {strides = array<i32>} : memref<16x16xf32, #tpu.memory_space<vmem>>, vector<16x16xf32>,
    } else {
    }
    %c0 = arith.constant 0 : index
    %c0_1 = arith.constant 0 : index
    %3 = vector.load %arg7[%c0, %c0_1] : memref<16x16xf32, #tpu.memory_space<vmem>>, vector<16x16xf32>
    %c0_2 = arith.constant 0 : index
    %c0_3 = arith.constant 0 : index
    %4 = vector.load %arg3[%c0_2, %c0_3] : memref<16x32xf32, #tpu.memory_space<vmem>>, vector<16x32xf32>
    %c0_4 = arith.constant 0 : index
    %c0_5 = arith.constant 0 : index
    %5 = vector.load %arg4[%c0_4, %c0_5] : memref<32x16xf32, #tpu.memory_space<vmem>>, vector<32x16xf32>
    %cst = arith.constant dense<0.000000e+00> : vector<16x16xf32>
    %6 = tpu.matmul %4, %5, %cst {dimension_numbers = #tpu.dot_dimension_numbers<[1], [0], [0], [1], [0, 0, 1, 1], [], []>} : vector<16x32xf32>, vector<32x16xf32>, vector<16x16xf32> -> vector<16x16xf32>
    %7 = arith.addf %3, %6 : vector<16x16xf32>
    %c0_6 = arith.constant 0 : index
    %c0_7 = arith.constant 0 : index
    %8 = vector.load %arg7[%c0_6, %c0_7] : memref<16x16xf32, #tpu.memory_space<vmem>>, vector<16x16xf32>
    tpu.vector_store %arg7[%c0_6, %c0_7], %7 {strides = array<i32>} : memref<16x16xf32, #tpu.memory_space<vmem>>, vector<16x16xf32>,
    %c0_i32_8 = arith.constant 0 : i32
    %9 = arith.cmpi eq, %arg2, %c0_i32_8 : i32
    %10 = arith.extui %9 : i1 to i32
    %c0_i32_9 = arith.constant 0 : i32
    %11 = arith.cmpi ne, %10, %c0_i32_9 : i32
    scf.if %11 {
      %c0_10 = arith.constant 0 : index
      %c0_11 = arith.constant 0 : index
      %12 = vector.load %arg7[%c0_10, %c0_11] : memref<16x16xf32, #tpu.memory_space<vmem>>, vector<16x16xf32>
      %c0_12 = arith.constant 0 : index
      %c0_13 = arith.constant 0 : index
      %13 = vector.load %arg5[%c0_12, %c0_13] : memref<1x16xf32, #tpu.memory_space<vmem>>, vector<1x16xf32>
      %14 = vector.broadcast %13 : vector<1x16xf32> to vector<16x16xf32>
      %15 = arith.addf %12, %14 : vector<16x16xf32>
      %c0_14 = arith.constant 0 : index
      %c0_15 = arith.constant 0 : index
      %16 = vector.load %arg6[%c0_14, %c0_15] : memref<16x16xf32, #tpu.memory_space<vmem>>, vector<16x16xf32>
      tpu.vector_store %arg6[%c0_14, %c0_15], %15 {strides = array<i32>} : memref<16x16xf32, #tpu.memory_space<vmem>>, vector<16x16xf32>,
    } else {
    }
    return
  }
  func.func @transform_0(%arg0: i32, %arg1: i32, %arg2: i32) -> (i32, i32) {
    %c0_i32 = arith.constant 0 : i32
    return %arg0, %arg2 : i32, i32
  }
  func.func @transform_1(%arg0: i32, %arg1: i32, %arg2: i32) -> (i32, i32) {
    %c0_i32 = arith.constant 0 : i32
    return %arg2, %arg1 : i32, i32
  }
  func.func @transform_2(%arg0: i32, %arg1: i32, %arg2: i32) -> (i32, i32) {
    %c0_i32 = arith.constant 0 : i32
    %c0_i32_0 = arith.constant 0 : i32
    return %c0_i32, %arg1 : i32, i32
  }
  func.func @transform_3(%arg0: i32, %arg1: i32, %arg2: i32) -> (i32, i32) {
    %c0_i32 = arith.constant 0 : i32
    return %arg0, %arg1 : i32, i32
  }
}

</mosaic_0001>

<llo_original>
// kernel: tpu_custom_call.1
$region0: #{tpu_custom_call.1}
  #allocation0 [shape = 'u32[]', space=smem, size = 0x4, offset = 0x4, fixed_abs, tag = 'smem constant byte address 0x4 - core index']
  #allocation1 [shape = 'u32[72,128]{1,0:T(1,128)}', space=vmem, size = 0x9000, scoped, tag = 'internal scratch']
  #allocation2 [shape = 'f32[16,16]{1,0:T(8,128)}', space=vmem, size = 0x2000, scoped, tag = 'scratch operand']
  %s0 = inlined_call_operand.vmem [shape: f32[16,32], index: 0, kind: input, shape index: {}]
  %s1 = inlined_call_operand.vmem [shape: f32[32,16], index: 1, kind: input, shape index: {}]
  %s2 = inlined_call_operand.vmem [shape: f32[1,16], index: 2, kind: input, shape index: {}]
  %s3 = inlined_call_operand.hbm [shape: f32[16,16], index: 3, kind: output, shape index: {}]
  %s4 = sld [smem:[#allocation0]]
  $region30: #{tpu_custom_call.1} parent=0
    _
  %s6 = ssub.s32 1, %s4
  %s7 = scalar_select 0, %s6, %s4
  $region1: #{tpu_custom_call.1} parent=0
    #allocation3 [shape = 'u8[8192]{0}', space=vmem, size = 0x2000, scoped, tag = 'output window, operand 0, single buffered']
    #allocation4 [shape = 's32[1]{0}', space=sflag, size = 0x4, scoped, tag = 'scoped memory for tpu_custom_call.1']
    %8 = vsyncpa [#allocation4], 0
    // Predicated region
    $region2: #{tpu_custom_call.1} parent=1 // pred_check
      _
    $region3: #{tpu_custom_call.1} parent=1 // pred_check_branch
      %10 = sbr.rel (0) target = $region5
    $region4: #{tpu_custom_call.1} parent=1 // pred_region
      _
    $region5: #{tpu_custom_call.1} parent=1 // pred_fallthru
      _
    // Predicated region
    $region6: #{tpu_custom_call.1} parent=1 // pred_check
      _
    $region7: #{tpu_custom_call.1} parent=1 // pred_check_branch
      %12 = sbr.rel (0) target = $region9
    $region8: #{tpu_custom_call.1} parent=1 // pred_region
      _
    $region9: #{tpu_custom_call.1} parent=1 // pred_fallthru
      _
    // Predicated region
    $region10: #{tpu_custom_call.1} parent=1 // pred_check
      _
    $region11: #{tpu_custom_call.1} parent=1 // pred_check_branch
      %14 = sbr.rel (0) target = $region13
    $region12: #{tpu_custom_call.1} parent=1 // pred_region
      _
    $region13: #{tpu_custom_call.1} parent=1 // pred_fallthru
      _
    %p15 = scmp.eq.s32.totalorder 0, 0
    // Predicated region
    $region14: #{tpu_custom_call.1} parent=1 // pred_check
      %p16 = pneg %p15
    $region15: #{tpu_custom_call.1} parent=1 // pred_check_branch
      %18 = sbr.rel (%p16) target = $region17
    $region16: #{tpu_custom_call.1} parent=1 // pred_region
      %vm19 = vcmask 130048
      %20 = vst.msk [vmem:[#allocation2] sm:$0xff] %vm19, 0.0
      %21 = vst.msk [vmem:[#allocation2 + $0x8] sm:$0xff] %vm19, 0.0
    $region17: #{tpu_custom_call.1} parent=1 // pred_fallthru
      _
    %v22 = vld [vmem:[#allocation2] sm:$0xff]
    %v23 = vld [vmem:[#allocation2 + $0x8] sm:$0xff]
    %v24 = vld [vmem:[%s0] sm:$0xff]
    %v25 = vld [vmem:[%s0 + $0x8] sm:$0xff]
    %v26 = vld [vmem:[%s1] sm:$0xff]
    %v27 = vld [vmem:[%s1 + $0x8] sm:$0xff]
    %v28 = vld [vmem:[%s1 + $0x10] sm:$0xff]
    %v29 = vld [vmem:[%s1 + $0x18] sm:$0xff]
    %vm30 = vcmask 261120
    %v32 = vsel %vm30, %v24, 0
    %v35 = vsel %vm30, %v25, 0
    %37 = vmatpush.msra.mxu0 0.0
    %38 = vmatpush.msra.mxu0 0.0
    %39 = vmatpush.msra.mxu0 0.0
    %40 = vmatpush.msra.mxu0 0.0
    %41 = vmatpush.msra.mxu0 0.0
    %42 = vmatpush.msra.mxu0 0.0
    %43 = vmatpush.msra.mxu0 0.0
    %44 = vmatpush.msra.mxu0 0.0
    %45 = vmatpush.msra.mxu0 0.0
    %46 = vmatpush.msra.mxu0 0.0
    %47 = vmatpush.msra.mxu0 0.0
    %48 = vmatpush.msra.mxu0 0.0
    %49 = vmatpush.msra.mxu0 %v29
    %50 = vmatpush.msra.mxu0 %v28
    %51 = vmatpush.msra.mxu0 %v27
    %52 = vmatpush.msra.mxu0 %v26
    %53 = vmatmul.f32.gmra.mxu0 %v32
    %v54 = vpop.f32.mrf.mxu0
    %v55 = vadd.f32 0.0, %v54
    %56 = vmatmul.f32.gmra.mxu0 %v35
    %v57 = vpop.f32.mrf.mxu0
    %v58 = vadd.f32 0.0, %v57
    %59 = vdwg.mxu0
    %v60 = vadd.f32 %v22, %v55
    %v61 = vadd.f32 %v23, %v58
    %vm62 = vcmask 130048
    %63 = vst.msk [vmem:[#allocation2] sm:$0xff] %vm62, %v60
    %64 = vst.msk [vmem:[#allocation2 + $0x8] sm:$0xff] %vm62, %v61
    // Predicated region
    $region18: #{tpu_custom_call.1} parent=1 // pred_check
      %p65 = pneg %p15
    $region19: #{tpu_custom_call.1} parent=1 // pred_check_branch
      %67 = sbr.rel (%p65) target = $region21
    $region20: #{tpu_custom_call.1} parent=1 // pred_region
      %v68 = vld [vmem:[#allocation2] sm:$0xff]
      %v69 = vld [vmem:[#allocation2 + $0x8] sm:$0xff]
      %v70 = vld [vmem:[%s2] sm:$0x1]
      %v72 = vperm.slane %v70, 0
      %v74 = vadd.f32 %v68, %v72
      %v75 = vadd.f32 %v69, %v72
      %76 = vst.msk [vmem:[#allocation3] sm:$0xff] %vm62, %v74
      %77 = vst.msk [vmem:[#allocation3 + $0x8] sm:$0xff] %vm62, %v75
    $region21: #{tpu_custom_call.1} parent=1 // pred_fallthru
      _
    // Predicated region
    $region22: #{tpu_custom_call.1} parent=1 // pred_check
      _
    $region23: #{tpu_custom_call.1} parent=1 // pred_check_branch
      %79 = sbr.rel (0) target = $region25
    $region24: #{tpu_custom_call.1} parent=1 // pred_region
      %81 = vsyncadd [#allocation4], 0
      %s82 = sshll.u32 [#allocation3], 4
      %s83 = int_to_ptr.vmem [resolvable:$true] %s82
      %s84 = sshll.u32 %s3, 4
      %s85 = int_to_ptr.hbm [resolvable:$true] %s84
      %90 = dma.vmem_to_hbm [thread:$0]  %s83, 256, %s85, [#allocation4], 128, 128, 8
    $region25: #{tpu_custom_call.1} parent=1 // pred_fallthru
      _
    // Predicated region
    $region26: #{tpu_custom_call.1} parent=1 // pred_check
      _
    $region27: #{tpu_custom_call.1} parent=1 // pred_check_branch
      %92 = sbr.rel (0) target = $region29
    $region28: #{tpu_custom_call.1} parent=1 // pred_region
      %94 = dma.done [#allocation4], 256
    $region29: #{tpu_custom_call.1} parent=1 // pred_fallthru
      _
    %95 = vsyncpa [#allocation4], 1

</llo_original>
